<compile_context>
chip_gen: v7x
topology: tpu7x:2x2x1
jax: 0.10.0
libtpu: 0.0.40
codegen_flags: <defaults>
</compile_context>

<pallas_src>
import functools

import jax
import jax.numpy as jnp
from jax.experimental import pallas as pl
from jax.experimental.pallas import tpu as pltpu


def _smape_kernel(pred_ref, targ_ref, out_ref, acc_ref, *, scale, rows_total,
                  block_rows, chunks_per_p, needs_mask):
    i = pl.program_id(1)

    @pl.when(i == 0)
    def _():
        acc_ref[...] = jnp.zeros_like(acc_ref)

    p = pred_ref[...].astype(jnp.float32)   # (block_rows, 128)
    t = targ_ref[...].astype(jnp.float32)   # (block_rows, 128)

    c = jnp.abs(p) + jnp.abs(t)
    valid = c >= 0.001                      # PyTorch "skip" branch (also kills zero padding)

    if needs_mask:
        # Mask rows beyond the real array (ragged last block / clamped OOB blocks).
        chunk = pl.program_id(0) * chunks_per_p + i
        row_idx = chunk * block_rows + jax.lax.broadcasted_iota(jnp.int32, c.shape, 0)
        valid = jnp.logical_and(valid, row_idx < rows_total)

    # Safe denominator keeps masked lanes finite; the where() zeroes them.
    term = jnp.where(valid, jnp.abs(t - p) / jnp.where(valid, c, 1.0), 0.0)

    # VALU-only partial-sum tree into one vreg; XLU reduce deferred to finalize.
    acc_ref[...] += term.reshape(block_rows // 8, 8, 128).sum(axis=0)

    @pl.when(i == pl.num_programs(1) - 1)
    def _():
        out_ref[...] = (jnp.sum(acc_ref[...]) * scale).reshape(1, 1)


def smape_loss1(predictions, targets, *, block_rows=8192, num_parallel=2):
    """predictions, targets: (B, S, 1) (f32 or bf16) -> shape-(1,) f32 loss."""
    assert predictions.shape == targets.shape
    B, S = targets.shape[0], targets.shape[1]
    total = int(predictions.size)
    scale = 200.0 / (S * B)   # fold per-batch scale + batch average into one constant

    dtype = predictions.dtype
    itemsize = jnp.dtype(dtype).itemsize

    pred = predictions.reshape(total)
    targ = targets.reshape(total)

    # Lane-dense layout: (rows, 128). Reshape is a free bitcast when total%128==0.
    # TODO(synk): when total % 128 != 0 a <=127-element pad (one array copy) is
    # still needed for the lane-dense reshape; everything else is masked in-kernel.
    rem = total % 128
    if rem:
        pred = jnp.pad(pred, (0, 128 - rem))   # zeros -> c = 0 -> masked by c<0.001
        targ = jnp.pad(targ, (0, 128 - rem))
    rows = (total + 127) // 128
    pred2d = pred.reshape(rows, 128)
    targ2d = targ.reshape(rows, 128)

    # dtype-aware sublane multiple: 8 (f32), 16 (bf16), 32 (int8/fp8).
    sub = max(8, 32 // max(itemsize, 1))
    block_rows = int(block_rows)
    block_rows = max(sub, min(block_rows, 16384))     # 16384 rows keeps buffers well under v7x's 64 MiB VMEM
    block_rows = (block_rows // sub) * sub
    rows_rounded = ((rows + sub - 1) // sub) * sub
    block_rows = min(block_rows, rows_rounded)        # never allocate more than the array needs

    chunks_total = pl.cdiv(rows, block_rows)
    P = max(1, min(int(num_parallel), chunks_total))  # parallel partial sums (2 TCs on v7x)
    chunks_per_p = pl.cdiv(chunks_total, P)
    last_block = chunks_total - 1

    # True if any block overhangs the array (ragged tail or fully-OOB clamped block).
    needs_mask = (P * chunks_per_p * block_rows) > rows

    def in_map(p, i):
        # Clamp fully out-of-range block indices to the last valid block;
        # their contribution is zeroed by the in-kernel row mask.
        return (jnp.minimum(p * chunks_per_p + i, last_block), 0)

    kernel = functools.partial(
        _smape_kernel, scale=scale, rows_total=rows, block_rows=block_rows,
        chunks_per_p=chunks_per_p, needs_mask=needs_mask)

    # 2 inputs x 2 pipeline buffers x tile bytes, plus headroom for out/scratch.
    block_bytes = block_rows * 128 * itemsize
    vmem_limit = max(16 << 20, min(4 * block_bytes + (2 << 20), 48 << 20))

    out = pl.pallas_call(
        kernel,
        out_shape=jax.ShapeDtypeStruct((P, 1), jnp.float32),
        grid_spec=pltpu.PrefetchScalarGridSpec(
            num_scalar_prefetch=0,
            grid=(P, chunks_per_p),
            in_specs=[
                pl.BlockSpec((block_rows, 128), in_map),
                pl.BlockSpec((block_rows, 128), in_map),
            ],
            out_specs=pl.BlockSpec((1, 1), lambda p, i: (p, 0)),
            scratch_shapes=[pltpu.VMEM((8, 128), jnp.float32)],
        ),
        compiler_params=pltpu.CompilerParams(
            dimension_semantics=("parallel", "arbitrary"),
            vmem_limit_bytes=int(vmem_limit),
        ),
        cost_estimate=pl.CostEstimate(
            flops=6 * total,
            transcendentals=total,
            bytes_accessed=2 * itemsize * total + 4 * P,
        ),
    )(pred2d, targ2d)

    # Sum the per-core partial results; matches PyTorch's shape-(1,) output.
    return jnp.sum(out, dtype=jnp.float32).reshape(1)


def _reference(predictions, targets):
    B, S = targets.shape[0], targets.shape[1]
    p = predictions.reshape(B, S).astype(jnp.float32)
    t = targets.reshape(B, S).astype(jnp.float32)
    c = jnp.abs(p) + jnp.abs(t)
    term = jnp.where(c < 0.001, 0.0, jnp.abs(t - p) / jnp.where(c < 0.001, 1.0, c))
    return jnp.sum(jnp.sum(term, axis=1) * (200.0 / S)) / B


if __name__ == "__main__":
    key = jax.random.PRNGKey(0)
    kp, kt, kp2, kt2 = jax.random.split(key, 4)

    # Case 1: small shape matching the module's implied layout (B, S, 1).
    B, S = 2, 8
    predictions = jax.random.normal(kp, (B, S, 1), dtype=jnp.float32)
    targets = jax.random.normal(kt, (B, S, 1), dtype=jnp.float32)
    # force one near-zero pair to exercise the skip branch
    predictions = predictions.at[0, 0, 0].set(1e-5)
    targets = targets.at[0, 0, 0].set(-1e-5)

    result = smape_loss1(predictions, targets)
    jax.block_until_ready(result)
    ref = _reference(predictions, targets)
    assert jnp.allclose(result[0], ref, rtol=1e-4, atol=1e-4), (result, ref)

    # Case 2: larger, non-128-multiple length, tiny block size to exercise the
    # multi-chunk grid, the parallel partial-sum axis, the index_map clamp and
    # the in-kernel tail masking.
    B2, S2 = 3, 1000
    p2 = jax.random.normal(kp2, (B2, S2, 1), dtype=jnp.float32)
    t2 = jax.random.normal(kt2, (B2, S2, 1), dtype=jnp.float32)
    result2 = smape_loss1(p2, t2, block_rows=8, num_parallel=2)
    jax.block_until_ready(result2)
    ref2 = _reference(p2, t2)
    assert jnp.allclose(result2[0], ref2, rtol=1e-4, atol=1e-3), (result2, ref2)

    print("KERNEL_OK")
</pallas_src>

<mosaic_0001>
module attributes {stable_mosaic.version = 11 : i64} {
  func.func @_smape_kernel(%arg0: i32, %arg1: i32, %arg2: memref<8x128xf32, #tpu.memory_space<vmem>>, %arg3: memref<8x128xf32, #tpu.memory_space<vmem>>, %arg4: memref<1x1xf32, #tpu.memory_space<vmem>>, %arg5: memref<8x128xf32, #tpu.memory_space<vmem>>) attributes {dimension_semantics = [#tpu.dimension_semantics<parallel>, #tpu.dimension_semantics<arbitrary>], iteration_bounds = array<i64: 1, 1>, scalar_prefetch = 0 : i64, scratch_operands = 1 : i64, tpu.core_type = #tpu.core_type<tc>, window_params = [{transform_indices = @transform_0, window_bounds = array<i64: 8, 128>}, {transform_indices = @transform_1, window_bounds = array<i64: 8, 128>}, {transform_indices = @transform_2, window_bounds = array<i64: 1, 1>}]} {
    %c0_i32 = arith.constant 0 : i32
    %0 = arith.cmpi eq, %arg1, %c0_i32 : i32
    %1 = arith.extui %0 : i1 to i32
    %c0_i32_0 = arith.constant 0 : i32
    %2 = arith.cmpi ne, %1, %c0_i32_0 : i32
    scf.if %2 {
      %cst_14 = arith.constant 0.000000e+00 : f32
      %34 = vector.broadcast %cst_14 : f32 to vector<8x128xf32>
      %c0_15 = arith.constant 0 : index
      %c0_16 = arith.constant 0 : index
      %35 = vector.load %arg5[%c0_15, %c0_16] : memref<8x128xf32, #tpu.memory_space<vmem>>, vector<8x128xf32>
      tpu.vector_store %arg5[%c0_15, %c0_16], %34 {strides = array<i32>} : memref<8x128xf32, #tpu.memory_space<vmem>>, vector<8x128xf32>,
    } else {
    }
    %c0 = arith.constant 0 : index
    %c0_1 = arith.constant 0 : index
    %3 = vector.load %arg2[%c0, %c0_1] : memref<8x128xf32, #tpu.memory_space<vmem>>, vector<8x128xf32>
    %c0_2 = arith.constant 0 : index
    %c0_3 = arith.constant 0 : index
    %4 = vector.load %arg3[%c0_2, %c0_3] : memref<8x128xf32, #tpu.memory_space<vmem>>, vector<8x128xf32>
    %5 = math.absf %3 : vector<8x128xf32>
    %6 = math.absf %4 : vector<8x128xf32>
    %7 = arith.addf %5, %6 : vector<8x128xf32>
    %cst = arith.constant 1.000000e-03 : f32
    %8 = vector.broadcast %cst : f32 to vector<8x128xf32>
    %9 = arith.cmpf oge, %7, %8 : vector<8x128xf32>
    %c1_i32 = arith.constant 1 : i32
    %10 = arith.muli %arg0, %c1_i32 : i32
    %11 = arith.addi %10, %arg1 : i32
    %c8_i32 = arith.constant 8 : i32
    %12 = arith.muli %11, %c8_i32 : i32
    %13 = tpu.iota {dimensions = array<i32: 0>} : vector<8x128xi32>
    %14 = vector.broadcast %12 : i32 to vector<8x128xi32>
    %15 = arith.addi %14, %13 : vector<8x128xi32>
    %c1_i32_4 = arith.constant 1 : i32
    %16 = vector.broadcast %c1_i32_4 : i32 to vector<8x128xi32>
    %17 = arith.cmpi slt, %15, %16 : vector<8x128xi32>
    %18 = arith.andi %9, %17 : vector<8x128xi1>
    %19 = arith.subf %4, %3 : vector<8x128xf32>
    %20 = math.absf %19 : vector<8x128xf32>
    %cst_5 = arith.constant 1.000000e+00 : f32
    %21 = vector.broadcast %cst_5 : f32 to vector<8x128xf32>
    %22 = arith.select %18, %7, %21 : vector<8x128xi1>, vector<8x128xf32>
    %23 = arith.divf %20, %22 : vector<8x128xf32>
    %cst_6 = arith.constant 0.000000e+00 : f32
    %24 = vector.broadcast %cst_6 : f32 to vector<8x128xf32>
    %25 = arith.select %18, %23, %24 : vector<8x128xi1>, vector<8x128xf32>
    %c0_7 = arith.constant 0 : index
    %c0_8 = arith.constant 0 : index
    %26 = vector.load %arg5[%c0_7, %c0_8] : memref<8x128xf32, #tpu.memory_space<vmem>>, vector<8x128xf32>
    %27 = vector.shape_cast %25 : vector<8x128xf32> to vector<1x8x128xf32>
    %cst_9 = arith.constant dense<0.000000e+00> : vector<8x128xf32>
    %28 = vector.multi_reduction <add>, %27, %cst_9 [0] : vector<1x8x128xf32> to vector<8x128xf32>
    %29 = arith.addf %26, %28 : vector<8x128xf32>
    %c0_10 = arith.constant 0 : index
    %c0_11 = arith.constant 0 : index
    %30 = vector.load %arg5[%c0_10, %c0_11] : memref<8x128xf32, #tpu.memory_space<vmem>>, vector<8x128xf32>
    tpu.vector_store %arg5[%c0_10, %c0_11], %29 {strides = array<i32>} : memref<8x128xf32, #tpu.memory_space<vmem>>, vector<8x128xf32>,
    %c0_i32_12 = arith.constant 0 : i32
    %31 = arith.cmpi eq, %arg1, %c0_i32_12 : i32
    %32 = arith.extui %31 : i1 to i32
    %c0_i32_13 = arith.constant 0 : i32
    %33 = arith.cmpi ne, %32, %c0_i32_13 : i32
    scf.if %33 {
      %c0_14 = arith.constant 0 : index
      %c0_15 = arith.constant 0 : index
      %34 = vector.load %arg5[%c0_14, %c0_15] : memref<8x128xf32, #tpu.memory_space<vmem>>, vector<8x128xf32>
      %35 = vector.shape_cast %34 : vector<8x128xf32> to vector<1x8x128xf32>
      %cst_16 = arith.constant dense<0.000000e+00> : vector<1xf32>
      %36 = vector.multi_reduction <add>, %35, %cst_16 [1, 2] : vector<1x8x128xf32> to vector<1xf32>
      %37 = vector.shape_cast %36 : vector<1xf32> to vector<1x1x1xf32>
      %38 = vector.extract %37[0, 0, 0] : f32 from vector<1x1x1xf32>
      %cst_17 = arith.constant 1.250000e+01 : f32
      %39 = arith.mulf %38, %cst_17 : f32
      %40 = vector.broadcast %39 : f32 to vector<1x1xf32>
      %c0_18 = arith.constant 0 : index
      %c0_19 = arith.constant 0 : index
      %41 = vector.load %arg4[%c0_18, %c0_19] : memref<1x1xf32, #tpu.memory_space<vmem>>, vector<1x1xf32>
      tpu.vector_store %arg4[%c0_18, %c0_19], %40 {strides = array<i32>} : memref<1x1xf32, #tpu.memory_space<vmem>>, vector<1x1xf32>,
    } else {
    }
    return
  }
  func.func @transform_0(%arg0: i32, %arg1: i32) -> (i32, i32) {
    %c1_i32 = arith.constant 1 : i32
    %0 = arith.muli %arg0, %c1_i32 : i32
    %1 = arith.addi %0, %arg1 : i32
    %c0_i32 = arith.constant 0 : i32
    %2 = arith.minsi %1, %c0_i32 : i32
    %c0_i32_0 = arith.constant 0 : i32
    %c0_i32_1 = arith.constant 0 : i32
    return %2, %c0_i32_0 : i32, i32
  }
  func.func @transform_1(%arg0: i32, %arg1: i32) -> (i32, i32) {
    %c1_i32 = arith.constant 1 : i32
    %0 = arith.muli %arg0, %c1_i32 : i32
    %1 = arith.addi %0, %arg1 : i32
    %c0_i32 = arith.constant 0 : i32
    %2 = arith.minsi %1, %c0_i32 : i32
    %c0_i32_0 = arith.constant 0 : i32
    %c0_i32_1 = arith.constant 0 : i32
    return %2, %c0_i32_0 : i32, i32
  }
  func.func @transform_2(%arg0: i32, %arg1: i32) -> (i32, i32) {
    %c0_i32 = arith.constant 0 : i32
    %c0_i32_0 = arith.constant 0 : i32
    return %arg0, %c0_i32 : i32, i32
  }
}

</mosaic_0001>

<llo_original>
// kernel: tpu_custom_call.1
$region0: #{tpu_custom_call.1}
  #allocation0 [shape = 'u32[]', space=smem, size = 0x4, offset = 0x4, fixed_abs, tag = 'smem constant byte address 0x4 - core index']
  #allocation1 [shape = 'u32[144,128]{1,0:T(1,128)}', space=vmem, size = 0x12000, scoped, tag = 'internal scratch']
  #allocation2 [shape = 'f32[8,128]{1,0:T(8,128)}', space=vmem, size = 0x1000, scoped, tag = 'scratch operand']
  %s0 = inlined_call_operand.hbm [shape: f32[1,128], index: 0, kind: input, shape index: {}]
  %s1 = inlined_call_operand.vmem [shape: f32[1,128], index: 1, kind: input, shape index: {}]
  %s2 = inlined_call_operand.hbm [shape: f32[1,1], index: 2, kind: output, shape index: {}]
  %s3 = sld [smem:[#allocation0]]
  $region30: #{tpu_custom_call.1} parent=0
    _
  %s5 = ssub.s32 1, %s3
  %s6 = scalar_select 0, %s5, %s3
  $region1: #{tpu_custom_call.1} parent=0
    #allocation3 [shape = 'u8[4096]{0}', space=vmem, size = 0x1000, scoped, tag = 'input window, operand 0, single buffered']
    #allocation4 [shape = 's32[1]{0}', space=sflag, size = 0x4, scoped, tag = 'scoped memory for tpu_custom_call.1']
    #allocation5 [shape = 's32[1]{0}', space=sflag, size = 0x4, scoped, tag = 'scoped memory for tpu_custom_call.1']
    #allocation6 [shape = 'u8[512]{0}', space=vmem, size = 0x400, scoped, tag = 'output window, operand 0, single buffered']
    %7 = vsyncpa [#allocation4], 0
    %8 = vsyncpa [#allocation5], 0
    // Predicated region
    $region2: #{tpu_custom_call.1} parent=1 // pred_check
      _
    $region3: #{tpu_custom_call.1} parent=1 // pred_check_branch
      %10 = sbr.rel (0) target = $region5
    $region4: #{tpu_custom_call.1} parent=1 // pred_region
      %s11 = sadd.s32 0, 0
      %p12 = scmp.lt.s32.totalorder %s11, 0
      %s13 = scalar_select %p12, %s11, 0
      %s14 = smul.u32 8, %s13
      %s15 = ssub.s32 1, %s14
      %s16 = smul.u32 16, %s15
      %s18 = ssub.s32 128, %s16
      %19 = vsyncadd [#allocation4], %s18
      %p20 = scmp.ne.s32.totalorder 0, %s16
      %s21 = smul.addr %s14, 16
      %s22 = scalar_lea.hbm %s0, %s21
      %s23 = sshll.u32 [#allocation3], 4
      %s24 = int_to_ptr.vmem [resolvable:$true] %s23
      %s25 = sshll.u32 %s15, 4
      %29 = dma.hbm_to_vmem [thread:$0]  (%p20), %s22, %s25, %s24, [#allocation4], 16, 16, 1
    $region5: #{tpu_custom_call.1} parent=1 // pred_fallthru
      _
    // Predicated region
    $region6: #{tpu_custom_call.1} parent=1 // pred_check
      _
    $region7: #{tpu_custom_call.1} parent=1 // pred_check_branch
      %31 = sbr.rel (0) target = $region9
    $region8: #{tpu_custom_call.1} parent=1 // pred_region
      %s32 = sadd.s32 0, 0
      %p33 = scmp.lt.s32.totalorder %s32, 0
      %s34 = scalar_select %p33, %s32, 0
      %s35 = smul.u32 8, %s34
      %s36 = ssub.s32 1, %s35
      %s37 = smul.u32 16, %s36
      %p38 = scmp.lt.s32.totalorder %s35, 0
      %s39 = scalar_select %p38, %s35, 0
      %s40 = scalar_lea.vmem %s1, %s39
      %s41 = sadd.s32 0, 0
      %p42 = scmp.lt.s32.totalorder %s41, 0
      %s43 = scalar_select %p42, %s41, 0
      %s44 = smul.u32 8, %s43
      %s45 = ssub.s32 1, %s44
      %s46 = smul.u32 16, %s45
    $region9: #{tpu_custom_call.1} parent=1 // pred_fallthru
      _
    // Predicated region
    $region10: #{tpu_custom_call.1} parent=1 // pred_check
      _
    $region11: #{tpu_custom_call.1} parent=1 // pred_check_branch
      %48 = sbr.rel (0) target = $region13
    $region12: #{tpu_custom_call.1} parent=1 // pred_region
      %49 = dma.done [#allocation4], 128
    $region13: #{tpu_custom_call.1} parent=1 // pred_fallthru
      _
    %s50 = sadd.s32 0, 0
    %p51 = scmp.lt.s32.totalorder %s50, 0
    %s52 = scalar_select %p51, %s50, 0
    %s53 = smul.u32 8, %s52
    %s54 = ssub.s32 1, %s53
    %s55 = smul.u32 16, %s54
    %p56 = scmp.lt.s32.totalorder %s53, 0
    %s57 = scalar_select %p56, %s53, 0
    %s58 = scalar_lea.vmem %s1, %s57
    %s59 = sadd.s32 0, 0
    %p60 = scmp.lt.s32.totalorder %s59, 0
    %s61 = scalar_select %p60, %s59, 0
    %s62 = smul.u32 8, %s61
    %s63 = ssub.s32 1, %s62
    %s64 = smul.u32 16, %s63
    %s65 = sadd.s32 0, 0
    %p66 = scmp.lt.s32.totalorder %s65, 0
    %s67 = scalar_select %p66, %s65, 0
    %s68 = smul.u32 8, %s67
    %s69 = ssub.s32 1, %s68
    %s70 = smul.u32 16, %s69
    %p71 = scmp.lt.s32.totalorder %s68, 0
    %s72 = scalar_select %p71, %s68, 0
    %s73 = scalar_lea.vmem %s1, %s72
    %s74 = sadd.s32 0, 0
    %p75 = scmp.lt.s32.totalorder %s74, 0
    %s76 = scalar_select %p75, %s74, 0
    %s77 = smul.u32 8, %s76
    %s78 = ssub.s32 1, %s77
    %s79 = smul.u32 16, %s78
    %p80 = scmp.eq.s32.totalorder 0, 0
    // Predicated region
    $region14: #{tpu_custom_call.1} parent=1 // pred_check
      %p81 = pneg %p80
    $region15: #{tpu_custom_call.1} parent=1 // pred_check_branch
      %83 = sbr.rel (%p81) target = $region17
    $region16: #{tpu_custom_call.1} parent=1 // pred_region
      %84 = vst [vmem:[#allocation2] sm:$0xff] 0.0
    $region17: #{tpu_custom_call.1} parent=1 // pred_fallthru
      _
    %v85 = vld [vmem:[#allocation3] sm:$0xff]
    %v86 = vld [vmem:[%s73] sm:$0xff]
    %v87 = vand.u32 2147483647, %v85
    %v88 = vand.u32 2147483647, %v86
    %v89 = vadd.f32 %v87, %v88
    %vm90 = vcmp.ge.f32.partialorder %v89, 0.001
    %s91 = sadd.s32 0, 0
    %s92 = smul.u32 %s91, 8
    %v93 = vlaneseq
    %v94 = vshrl.u32 %v93, 7
    %v95 = vstv %s92
    %v96 = vadd.s32 %v95, %v94
    %vm97 = vcmp.lt.s32.totalorder %v96, 1
    %vm98 = vmand %vm90, %vm97
    %v99 = vsub.f32 %v86, %v85
    %v100 = vand.u32 2147483647, %v99
    %v101 = vsel %vm98, %v89, 1.0
    %v102 = vrcp.pop %v101
    %v103 = vmul.f32 %v100, %v102
    %v104 = vsel %vm98, %v103, 0.0
    %v105 = vld [vmem:[#allocation2] sm:$0xff]
    %v106 = vadd.f32 %v104, 0.0
    %v107 = vadd.f32 %v105, %v106
    %108 = vst [vmem:[#allocation2] sm:$0xff] %v107
    // Predicated region
    $region18: #{tpu_custom_call.1} parent=1 // pred_check
      %p109 = pneg %p80
    $region19: #{tpu_custom_call.1} parent=1 // pred_check_branch
      %111 = sbr.rel (%p109) target = $region21
    $region20: #{tpu_custom_call.1} parent=1 // pred_region
      %v112 = vld [vmem:[#allocation2] sm:$0xff]
      %113 = vadd.xlane.f32.xlu0 %v112
      %v114 = vpop.xlane.xlu0 %113
      %v115 = vrot.slane %v114, 4
      %v116 = vadd.f32 %v114, %v115
      %v117 = vrot.slane %v116, 2
      %v118 = vadd.f32 %v116, %v117
      %v119 = vrot.slane %v118, 1
      %v120 = vadd.f32 %v118, %v119
      %s121 = vtos %v120
      %s122 = smul.f32 %s121, 12.5
      %v123 = vstv %s122
      %vm124 = vcmask 0
      %125 = vst.msk [vmem:[#allocation6] sm:$0x1] %vm124, %v123
    $region21: #{tpu_custom_call.1} parent=1 // pred_fallthru
      _
    // Predicated region
    $region22: #{tpu_custom_call.1} parent=1 // pred_check
      _
    $region23: #{tpu_custom_call.1} parent=1 // pred_check_branch
      %127 = sbr.rel (0) target = $region25
    $region24: #{tpu_custom_call.1} parent=1 // pred_region
      %s129 = ssub.s32 16, 16
      %130 = vsyncadd [#allocation5], %s129
      %s132 = sshll.u32 [#allocation6], 4
      %s133 = int_to_ptr.vmem [resolvable:$true] %s132
      %135 = dma.vmem_to_hbm [thread:$0]  %s133, 16, %s2, [#allocation5]
    $region25: #{tpu_custom_call.1} parent=1 // pred_fallthru
      _
    // Predicated region
    $region26: #{tpu_custom_call.1} parent=1 // pred_check
      _
    $region27: #{tpu_custom_call.1} parent=1 // pred_check_branch
      %137 = sbr.rel (0) target = $region29
    $region28: #{tpu_custom_call.1} parent=1 // pred_region
      %138 = dma.done [#allocation5], 16
    $region29: #{tpu_custom_call.1} parent=1 // pred_fallthru
      _
    %139 = vsyncpa [#allocation4], 1
    %140 = vsyncpa [#allocation5], 1

</llo_original>
